<compile_context>
chip_gen: v7x
topology: tpu7x:2x2x1
jax: 0.10.0
libtpu: 0.0.40
codegen_flags: <defaults>
</compile_context>

<pallas_src>
import functools

import jax
import jax.numpy as jnp
from jax.experimental import pallas as pl
from jax.experimental.pallas import tpu as pltpu

LANE = 128
SUBLANE = 8
# Combined (pred + target) bytes streamed per grid step (~4 MiB per input).
DEFAULT_BLOCK_BYTES = 8 << 20


def _padded_slice_bytes(h, w, dtype):
    """Bytes one (h, w) trailing slice occupies under TPU (sublane, 128) tiling."""
    item = jnp.dtype(dtype).itemsize
    sub = SUBLANE * max(1, 4 // item)          # f32: 8, bf16: 16, int8/fp8: 32
    hp = -(-h // sub) * sub
    wp = -(-w // LANE) * LANE
    return hp * wp * item


def _pick_tile_b(b, slice_bytes, target_block_bytes):
    """Leading-dim tile: as big as the byte budget allows; prefer a divisor of b
    (within 25% of the max) so no edge-block masking is needed."""
    max_tile = max(1, int(target_block_bytes) // max(1, slice_bytes))
    if b <= max_tile:
        return b
    lo = max(1, (3 * max_tile) // 4)
    for cand in range(max_tile, lo - 1, -1):
        if b % cand == 0:
            return cand
    return max_tile


def _partial_reduce(pred_ref, tgt_ref, out_ref, *, row_limit):
    """Reduce the current block into (sum of masked squared diffs, valid count).

    Writes the fused (1, 2, W) output block: row 0 = sums, row 1 = counts.
    `row_limit` (static) masks out-of-range leading rows on the ragged edge
    block; interior blocks pass None and pay no masking cost.
    """
    t = tgt_ref[...].astype(jnp.float32)
    p = pred_ref[...].astype(jnp.float32)

    valid = t > 0.0
    if row_limit is not None:
        rows = jax.lax.broadcasted_iota(jnp.int32, t.shape, 0)
        valid = jnp.logical_and(valid, rows < row_limit)

    d = jnp.where(valid, t - p, 0.0)

    # Per-lane partials (reduce the leading/sublane axes only); the tiny final
    # combine happens in the wrapper.
    out_ref[0, 0, :] = (d * d).sum(axis=0).sum(axis=0)
    out_ref[0, 1, :] = valid.astype(jnp.float32).sum(axis=0).sum(axis=0)


def _masked_mse_kernel(pred_ref, tgt_ref, out_ref, *, edge_rows, num_blocks):
    if edge_rows is None:
        # Tile divides the leading dim: uniform, mask-free fast path.
        _partial_reduce(pred_ref, tgt_ref, out_ref, row_limit=None)
    else:
        i = pl.program_id(0)

        @pl.when(i < num_blocks - 1)
        def _():
            _partial_reduce(pred_ref, tgt_ref, out_ref, row_limit=None)

        @pl.when(i == num_blocks - 1)
        def _():
            _partial_reduce(pred_ref, tgt_ref, out_ref, row_limit=edge_rows)


def masked_mse_loss(pred, target, *, target_block_bytes=DEFAULT_BLOCK_BYTES):
    assert pred.ndim == target.ndim, "inconsistent dimensions"
    assert pred.shape == target.shape, "inconsistent shapes"

    shape = pred.shape
    if pred.ndim >= 3:
        h, w = int(shape[-2]), int(shape[-1])
        b = 1
        for s in shape[:-2]:
            b *= int(s)
    elif pred.ndim == 2:
        b, h, w = 1, int(shape[0]), int(shape[1])
    else:
        # 0-D / 1-D fall back to a single trailing row.
        b, h, w = 1, 1, max(1, int(pred.size))

    # Collapsing / adding leading dims only -> layout-preserving (no HBM copy).
    pred3 = pred.reshape(b, h, w)
    tgt3 = target.reshape(b, h, w)

    slice_bytes = _padded_slice_bytes(h, w, pred.dtype) + _padded_slice_bytes(
        h, w, target.dtype)
    tile_b = _pick_tile_b(b, slice_bytes, target_block_bytes)
    num_blocks = pl.cdiv(b, tile_b)
    edge = b - (num_blocks - 1) * tile_b
    edge_rows = None if edge == tile_b else edge

    # 2 pipeline buffers per input + slack for outputs / internal scratch.
    block_in_bytes = tile_b * slice_bytes
    vmem_limit = min(max(2 * block_in_bytes + (8 << 20), 16 << 20), 64 << 20)

    kernel = functools.partial(
        _masked_mse_kernel, edge_rows=edge_rows, num_blocks=num_blocks)

    out = pl.pallas_call(
        kernel,
        out_shape=jax.ShapeDtypeStruct((num_blocks, 2, w), jnp.float32),
        grid_spec=pltpu.PrefetchScalarGridSpec(
            num_scalar_prefetch=0,
            grid=(num_blocks,),
            in_specs=[
                pl.BlockSpec((tile_b, h, w), lambda i: (i, 0, 0)),
                pl.BlockSpec((tile_b, h, w), lambda i: (i, 0, 0)),
            ],
            out_specs=pl.BlockSpec((1, 2, w), lambda i: (i, 0, 0)),
        ),
        compiler_params=pltpu.CompilerParams(
            dimension_semantics=("parallel",),
            vmem_limit_bytes=int(vmem_limit),
        ),
    )(pred3, tgt3)

    # Tiny final combine in plain JAX. Per-block/per-lane counts are exact
    # integers in f32 (< 2^24), so the int32 sum gives the exact valid count.
    total = jnp.sum(out[:, 0, :])
    count = jnp.sum(out[:, 1, :].astype(jnp.int32))
    # Empty mask -> 0/0 -> NaN, matching PyTorch's mean over an empty selection.
    return total / count.astype(jnp.float32)


def _reference(pred, target):
    mask = target > 0
    diff = jnp.where(mask, target - pred, 0.0)
    return jnp.sum(diff * diff) / jnp.sum(mask.astype(jnp.float32))


if __name__ == "__main__":
    key = jax.random.PRNGKey(0)

    # --- Primary test: NCHW depth-map-like input (as the PyTorch module sees).
    kp, kt = jax.random.split(key)
    shape = (2, 4, 16, 16)
    pred = jax.random.normal(kp, shape, dtype=jnp.float32)
    target = jax.random.normal(kt, shape, dtype=jnp.float32)   # ~half <= 0

    loss = jax.block_until_ready(masked_mse_loss(pred, target))
    ref = _reference(pred, target)
    assert jnp.allclose(loss, ref, rtol=1e-5, atol=1e-6), (loss, ref)

    # --- Secondary test: force a multi-block grid with a ragged edge block
    # (small block budget, prime leading dim) to exercise the masked path.
    kp2, kt2 = jax.random.split(jax.random.PRNGKey(0), 2)
    shape2 = (7, 16, 16)
    pred2 = jax.random.normal(kp2, shape2, dtype=jnp.float32)
    target2 = jax.random.normal(kt2, shape2, dtype=jnp.float32)
    small_budget = 3 * (_padded_slice_bytes(16, 16, jnp.float32) * 2)
    loss2 = jax.block_until_ready(
        masked_mse_loss(pred2, target2, target_block_bytes=small_budget))
    ref2 = _reference(pred2, target2)
    assert jnp.allclose(loss2, ref2, rtol=1e-5, atol=1e-6), (loss2, ref2)

    print("KERNEL_OK")
</pallas_src>

<mosaic_0001>
module attributes {stable_mosaic.version = 11 : i64} {
  func.func @_masked_mse_kernel(%arg0: i32, %arg1: memref<8x16x16xf32, #tpu.memory_space<vmem>>, %arg2: memref<8x16x16xf32, #tpu.memory_space<vmem>>, %arg3: memref<1x2x16xf32, #tpu.memory_space<vmem>>) attributes {dimension_semantics = [#tpu.dimension_semantics<parallel>], iteration_bounds = array<i64: 1>, scalar_prefetch = 0 : i64, scratch_operands = 0 : i64, tpu.core_type = #tpu.core_type<tc>, window_params = [{transform_indices = @transform_0, window_bounds = array<i64: 8, 16, 16>}, {transform_indices = @transform_1, window_bounds = array<i64: 8, 16, 16>}, {transform_indices = @transform_2, window_bounds = array<i64: 1, 2, 16>}]} {
    %c0 = arith.constant 0 : index
    %c0_0 = arith.constant 0 : index
    %c0_1 = arith.constant 0 : index
    %0 = vector.load %arg2[%c0, %c0_0, %c0_1] : memref<8x16x16xf32, #tpu.memory_space<vmem>>, vector<8x16x16xf32>
    %c0_2 = arith.constant 0 : index
    %c0_3 = arith.constant 0 : index
    %c0_4 = arith.constant 0 : index
    %1 = vector.load %arg1[%c0_2, %c0_3, %c0_4] : memref<8x16x16xf32, #tpu.memory_space<vmem>>, vector<8x16x16xf32>
    %cst = arith.constant 0.000000e+00 : f32
    %2 = vector.broadcast %cst : f32 to vector<8x16x16xf32>
    %3 = arith.cmpf ogt, %0, %2 : vector<8x16x16xf32>
    %4 = arith.subf %0, %1 : vector<8x16x16xf32>
    %cst_5 = arith.constant 0.000000e+00 : f32
    %5 = vector.broadcast %cst_5 : f32 to vector<8x16x16xf32>
    %6 = arith.select %3, %4, %5 : vector<8x16x16xi1>, vector<8x16x16xf32>
    %7 = arith.mulf %6, %6 : vector<8x16x16xf32>
    %cst_6 = arith.constant dense<0.000000e+00> : vector<16x16xf32>
    %8 = vector.multi_reduction <add>, %7, %cst_6 [0] : vector<8x16x16xf32> to vector<16x16xf32>
    %cst_7 = arith.constant dense<0.000000e+00> : vector<16xf32>
    %9 = vector.multi_reduction <add>, %8, %cst_7 [0] : vector<16x16xf32> to vector<16xf32>
    %c0_8 = arith.constant 0 : index
    %c0_9 = arith.constant 0 : index
    %c0_10 = arith.constant 0 : index
    %10 = vector.load %arg3[%c0_8, %c0_9, %c0_10] : memref<1x2x16xf32, #tpu.memory_space<vmem>>, vector<1x1x16xf32>
    %11 = vector.shape_cast %10 : vector<1x1x16xf32> to vector<16xf32>
    %12 = vector.shape_cast %9 : vector<16xf32> to vector<1x1x16xf32>
    tpu.vector_store %arg3[%c0_8, %c0_9, %c0_10], %12 {strides = array<i32>} : memref<1x2x16xf32, #tpu.memory_space<vmem>>, vector<1x1x16xf32>,
    %13 = arith.extui %3 : vector<8x16x16xi1> to vector<8x16x16xi32>
    %14 = arith.sitofp %13 : vector<8x16x16xi32> to vector<8x16x16xf32>
    %cst_11 = arith.constant dense<0.000000e+00> : vector<16x16xf32>
    %15 = vector.multi_reduction <add>, %14, %cst_11 [0] : vector<8x16x16xf32> to vector<16x16xf32>
    %cst_12 = arith.constant dense<0.000000e+00> : vector<16xf32>
    %16 = vector.multi_reduction <add>, %15, %cst_12 [0] : vector<16x16xf32> to vector<16xf32>
    %c0_13 = arith.constant 0 : index
    %c1 = arith.constant 1 : index
    %c0_14 = arith.constant 0 : index
    %17 = vector.load %arg3[%c0_13, %c1, %c0_14] : memref<1x2x16xf32, #tpu.memory_space<vmem>>, vector<1x1x16xf32>
    %18 = vector.shape_cast %17 : vector<1x1x16xf32> to vector<16xf32>
    %19 = vector.shape_cast %16 : vector<16xf32> to vector<1x1x16xf32>
    tpu.vector_store %arg3[%c0_13, %c1, %c0_14], %19 {strides = array<i32>} : memref<1x2x16xf32, #tpu.memory_space<vmem>>, vector<1x1x16xf32>,
    return
  }
  func.func @transform_0(%arg0: i32) -> (i32, i32, i32) {
    %c0_i32 = arith.constant 0 : i32
    %c0_i32_0 = arith.constant 0 : i32
    %c0_i32_1 = arith.constant 0 : i32
    return %arg0, %c0_i32, %c0_i32_0 : i32, i32, i32
  }
  func.func @transform_1(%arg0: i32) -> (i32, i32, i32) {
    %c0_i32 = arith.constant 0 : i32
    %c0_i32_0 = arith.constant 0 : i32
    %c0_i32_1 = arith.constant 0 : i32
    return %arg0, %c0_i32, %c0_i32_0 : i32, i32, i32
  }
  func.func @transform_2(%arg0: i32) -> (i32, i32, i32) {
    %c0_i32 = arith.constant 0 : i32
    %c0_i32_0 = arith.constant 0 : i32
    %c0_i32_1 = arith.constant 0 : i32
    return %arg0, %c0_i32, %c0_i32_0 : i32, i32, i32
  }
}

</mosaic_0001>

<llo_original>
// kernel: tpu_custom_call.1
$region0: #{tpu_custom_call.1}
  #allocation0 [shape = 'u32[]', space=smem, size = 0x4, offset = 0x4, fixed_abs, tag = 'smem constant byte address 0x4 - core index']
  #allocation1 [shape = 'u32[144,128]{1,0:T(1,128)}', space=vmem, size = 0x12000, scoped, tag = 'internal scratch']
  %s0 = inlined_call_operand.hbm [shape: f32[8,16,16], index: 0, kind: input, shape index: {}]
  %s1 = inlined_call_operand.hbm [shape: f32[8,16,16], index: 1, kind: input, shape index: {}]
  %s2 = inlined_call_operand.hbm [shape: f32[1,2,16], index: 2, kind: output, shape index: {}]
  %s3 = sld [smem:[#allocation0]]
  $region26: #{tpu_custom_call.1} parent=0
    _
  %s5 = ssub.s32 1, %s3
  %s6 = scalar_select 0, %s5, %s3
  $region1: #{tpu_custom_call.1} parent=0
    #allocation2 [shape = 'u8[65536]{0}', space=vmem, size = 0x10000, scoped, tag = 'input window, operand 0, single buffered']
    #allocation3 [shape = 's32[1]{0}', space=sflag, size = 0x4, scoped, tag = 'scoped memory for tpu_custom_call.1']
    #allocation4 [shape = 's32[1]{0}', space=sflag, size = 0x4, scoped, tag = 'scoped memory for tpu_custom_call.1']
    #allocation5 [shape = 'u8[65536]{0}', space=vmem, size = 0x10000, scoped, tag = 'input window, operand 1, single buffered']
    #allocation6 [shape = 's32[1]{0}', space=sflag, size = 0x4, scoped, tag = 'scoped memory for tpu_custom_call.1']
    #allocation7 [shape = 'u8[1024]{0}', space=vmem, size = 0x400, scoped, tag = 'output window, operand 0, single buffered']
    %7 = vsyncpa [#allocation3], 0
    %8 = vsyncpa [#allocation6], 0
    %9 = vsyncpa [#allocation4], 0
    // Predicated region
    $region2: #{tpu_custom_call.1} parent=1 // pred_check
      _
    $region3: #{tpu_custom_call.1} parent=1 // pred_check_branch
      %11 = sbr.rel (0) target = $region5
    $region4: #{tpu_custom_call.1} parent=1 // pred_region
      %s13 = ssub.s32 2048, 2048
      %14 = vsyncadd [#allocation3], %s13
      %s15 = sshll.u32 [#allocation2], 4
      %s16 = int_to_ptr.vmem [resolvable:$true] %s15
      %21 = dma.hbm_to_vmem [thread:$0]  %s0, 2048, %s16, [#allocation3], 128, 128, 8
    $region5: #{tpu_custom_call.1} parent=1 // pred_fallthru
      _
    // Predicated region
    $region6: #{tpu_custom_call.1} parent=1 // pred_check
      _
    $region7: #{tpu_custom_call.1} parent=1 // pred_check_branch
      %23 = sbr.rel (0) target = $region9
    $region8: #{tpu_custom_call.1} parent=1 // pred_region
      %s25 = ssub.s32 2048, 2048
      %26 = vsyncadd [#allocation6], %s25
      %s27 = sshll.u32 [#allocation5], 4
      %s28 = int_to_ptr.vmem [resolvable:$true] %s27
      %33 = dma.hbm_to_vmem [thread:$0]  %s1, 2048, %s28, [#allocation6], 128, 128, 8
    $region9: #{tpu_custom_call.1} parent=1 // pred_fallthru
      _
    // Predicated region
    $region10: #{tpu_custom_call.1} parent=1 // pred_check
      _
    $region11: #{tpu_custom_call.1} parent=1 // pred_check_branch
      %35 = sbr.rel (0) target = $region13
    $region12: #{tpu_custom_call.1} parent=1 // pred_region
      %36 = dma.done [#allocation3], 2048
    $region13: #{tpu_custom_call.1} parent=1 // pred_fallthru
      _
    // Predicated region
    $region14: #{tpu_custom_call.1} parent=1 // pred_check
      _
    $region15: #{tpu_custom_call.1} parent=1 // pred_check_branch
      %38 = sbr.rel (0) target = $region17
    $region16: #{tpu_custom_call.1} parent=1 // pred_region
      %39 = dma.done [#allocation6], 2048
    $region17: #{tpu_custom_call.1} parent=1 // pred_fallthru
      _
    %v40 = vld [vmem:[#allocation5] sm:$0xff]
    %v41 = vld [vmem:[#allocation5 + $0x8] sm:$0xff]
    %v42 = vld [vmem:[#allocation5 + $0x10] sm:$0xff]
    %v43 = vld [vmem:[#allocation5 + $0x18] sm:$0xff]
    %v44 = vld [vmem:[#allocation5 + $0x20] sm:$0xff]
    %v45 = vld [vmem:[#allocation5 + $0x28] sm:$0xff]
    %v46 = vld [vmem:[#allocation5 + $0x30] sm:$0xff]
    %v47 = vld [vmem:[#allocation5 + $0x38] sm:$0xff]
    %v48 = vld [vmem:[#allocation5 + $0x40] sm:$0xff]
    %v49 = vld [vmem:[#allocation5 + $0x48] sm:$0xff]
    %v50 = vld [vmem:[#allocation5 + $0x50] sm:$0xff]
    %v51 = vld [vmem:[#allocation5 + $0x58] sm:$0xff]
    %v52 = vld [vmem:[#allocation5 + $0x60] sm:$0xff]
    %v53 = vld [vmem:[#allocation5 + $0x68] sm:$0xff]
    %v54 = vld [vmem:[#allocation5 + $0x70] sm:$0xff]
    %v55 = vld [vmem:[#allocation5 + $0x78] sm:$0xff]
    %v56 = vld [vmem:[#allocation2] sm:$0xff]
    %v57 = vld [vmem:[#allocation2 + $0x8] sm:$0xff]
    %v58 = vld [vmem:[#allocation2 + $0x10] sm:$0xff]
    %v59 = vld [vmem:[#allocation2 + $0x18] sm:$0xff]
    %v60 = vld [vmem:[#allocation2 + $0x20] sm:$0xff]
    %v61 = vld [vmem:[#allocation2 + $0x28] sm:$0xff]
    %v62 = vld [vmem:[#allocation2 + $0x30] sm:$0xff]
    %v63 = vld [vmem:[#allocation2 + $0x38] sm:$0xff]
    %v64 = vld [vmem:[#allocation2 + $0x40] sm:$0xff]
    %v65 = vld [vmem:[#allocation2 + $0x48] sm:$0xff]
    %v66 = vld [vmem:[#allocation2 + $0x50] sm:$0xff]
    %v67 = vld [vmem:[#allocation2 + $0x58] sm:$0xff]
    %v68 = vld [vmem:[#allocation2 + $0x60] sm:$0xff]
    %v69 = vld [vmem:[#allocation2 + $0x68] sm:$0xff]
    %v70 = vld [vmem:[#allocation2 + $0x70] sm:$0xff]
    %v71 = vld [vmem:[#allocation2 + $0x78] sm:$0xff]
    %vm72 = vcmp.gt.f32.partialorder %v40, 0.0
    %vm73 = vcmp.gt.f32.partialorder %v41, 0.0
    %vm74 = vcmp.gt.f32.partialorder %v42, 0.0
    %vm75 = vcmp.gt.f32.partialorder %v43, 0.0
    %vm76 = vcmp.gt.f32.partialorder %v44, 0.0
    %vm77 = vcmp.gt.f32.partialorder %v45, 0.0
    %vm78 = vcmp.gt.f32.partialorder %v46, 0.0
    %vm79 = vcmp.gt.f32.partialorder %v47, 0.0
    %vm80 = vcmp.gt.f32.partialorder %v48, 0.0
    %vm81 = vcmp.gt.f32.partialorder %v49, 0.0
    %vm82 = vcmp.gt.f32.partialorder %v50, 0.0
    %vm83 = vcmp.gt.f32.partialorder %v51, 0.0
    %vm84 = vcmp.gt.f32.partialorder %v52, 0.0
    %vm85 = vcmp.gt.f32.partialorder %v53, 0.0
    %vm86 = vcmp.gt.f32.partialorder %v54, 0.0
    %vm87 = vcmp.gt.f32.partialorder %v55, 0.0
    %v88 = vsub.f32 %v40, %v56
    %v89 = vsub.f32 %v41, %v57
    %v90 = vsub.f32 %v42, %v58
    %v91 = vsub.f32 %v43, %v59
    %v92 = vsub.f32 %v44, %v60
    %v93 = vsub.f32 %v45, %v61
    %v94 = vsub.f32 %v46, %v62
    %v95 = vsub.f32 %v47, %v63
    %v96 = vsub.f32 %v48, %v64
    %v97 = vsub.f32 %v49, %v65
    %v98 = vsub.f32 %v50, %v66
    %v99 = vsub.f32 %v51, %v67
    %v100 = vsub.f32 %v52, %v68
    %v101 = vsub.f32 %v53, %v69
    %v102 = vsub.f32 %v54, %v70
    %v103 = vsub.f32 %v55, %v71
    %v104 = vsel %vm72, %v88, 0.0
    %v105 = vsel %vm73, %v89, 0.0
    %v106 = vsel %vm74, %v90, 0.0
    %v107 = vsel %vm75, %v91, 0.0
    %v108 = vsel %vm76, %v92, 0.0
    %v109 = vsel %vm77, %v93, 0.0
    %v110 = vsel %vm78, %v94, 0.0
    %v111 = vsel %vm79, %v95, 0.0
    %v112 = vsel %vm80, %v96, 0.0
    %v113 = vsel %vm81, %v97, 0.0
    %v114 = vsel %vm82, %v98, 0.0
    %v115 = vsel %vm83, %v99, 0.0
    %v116 = vsel %vm84, %v100, 0.0
    %v117 = vsel %vm85, %v101, 0.0
    %v118 = vsel %vm86, %v102, 0.0
    %v119 = vsel %vm87, %v103, 0.0
    %v120 = vmul.f32 %v104, %v104
    %v121 = vmul.f32 %v105, %v105
    %v122 = vmul.f32 %v106, %v106
    %v123 = vmul.f32 %v107, %v107
    %v124 = vmul.f32 %v108, %v108
    %v125 = vmul.f32 %v109, %v109
    %v126 = vmul.f32 %v110, %v110
    %v127 = vmul.f32 %v111, %v111
    %v128 = vmul.f32 %v112, %v112
    %v129 = vmul.f32 %v113, %v113
    %v130 = vmul.f32 %v114, %v114
    %v131 = vmul.f32 %v115, %v115
    %v132 = vmul.f32 %v116, %v116
    %v133 = vmul.f32 %v117, %v117
    %v134 = vmul.f32 %v118, %v118
    %v135 = vmul.f32 %v119, %v119
    %vm136 = vcmask 130048
    %v137 = vsel %vm136, %v120, 0.0
    %v138 = vsel %vm136, %v122, 0.0
    %v139 = vadd.f32 %v137, %v138
    %v140 = vsel %vm136, %v124, 0.0
    %v141 = vadd.f32 %v139, %v140
    %v142 = vsel %vm136, %v126, 0.0
    %v143 = vadd.f32 %v141, %v142
    %v144 = vsel %vm136, %v128, 0.0
    %v145 = vadd.f32 %v143, %v144
    %v146 = vsel %vm136, %v130, 0.0
    %v147 = vadd.f32 %v145, %v146
    %v148 = vsel %vm136, %v132, 0.0
    %v149 = vadd.f32 %v147, %v148
    %v150 = vsel %vm136, %v134, 0.0
    %v151 = vadd.f32 %v149, %v150
    %v152 = vsel %vm136, %v121, 0.0
    %v153 = vsel %vm136, %v123, 0.0
    %v154 = vadd.f32 %v152, %v153
    %v155 = vsel %vm136, %v125, 0.0
    %v156 = vadd.f32 %v154, %v155
    %v157 = vsel %vm136, %v127, 0.0
    %v158 = vadd.f32 %v156, %v157
    %v159 = vsel %vm136, %v129, 0.0
    %v160 = vadd.f32 %v158, %v159
    %v161 = vsel %vm136, %v131, 0.0
    %v162 = vadd.f32 %v160, %v161
    %v163 = vsel %vm136, %v133, 0.0
    %v164 = vadd.f32 %v162, %v163
    %v165 = vsel %vm136, %v135, 0.0
    %v166 = vadd.f32 %v164, %v165
    %v167 = vsel %vm136, %v151, 0.0
    %v168 = vsel %vm136, %v166, 0.0
    %v169 = vadd.f32 %v167, %v168
    %v170 = vrot.slane %v169, 4
    %v171 = vadd.f32 %v169, %v170
    %v172 = vrot.slane %v171, 2
    %v173 = vadd.f32 %v171, %v172
    %v174 = vrot.slane %v173, 1
    %v175 = vadd.f32 %v173, %v174
    %vm176 = vcmask 122880
    %177 = vst.msk [vmem:[#allocation7] sm:$0x1] %vm176, %v175
    %v178 = vsel %vm72, 1, 0
    %v179 = vsel %vm73, 1, 0
    %v180 = vsel %vm74, 1, 0
    %v181 = vsel %vm75, 1, 0
    %v182 = vsel %vm76, 1, 0
    %v183 = vsel %vm77, 1, 0
    %v184 = vsel %vm78, 1, 0
    %v185 = vsel %vm79, 1, 0
    %v186 = vsel %vm80, 1, 0
    %v187 = vsel %vm81, 1, 0
    %v188 = vsel %vm82, 1, 0
    %v189 = vsel %vm83, 1, 0
    %v190 = vsel %vm84, 1, 0
    %v191 = vsel %vm85, 1, 0
    %v192 = vsel %vm86, 1, 0
    %v193 = vsel %vm87, 1, 0
    %v194 = vcvt.s32.f32 %v178
    %v195 = vcvt.s32.f32 %v179
    %v196 = vcvt.s32.f32 %v180
    %v197 = vcvt.s32.f32 %v181
    %v198 = vcvt.s32.f32 %v182
    %v199 = vcvt.s32.f32 %v183
    %v200 = vcvt.s32.f32 %v184
    %v201 = vcvt.s32.f32 %v185
    %v202 = vcvt.s32.f32 %v186
    %v203 = vcvt.s32.f32 %v187
    %v204 = vcvt.s32.f32 %v188
    %v205 = vcvt.s32.f32 %v189
    %v206 = vcvt.s32.f32 %v190
    %v207 = vcvt.s32.f32 %v191
    %v208 = vcvt.s32.f32 %v192
    %v209 = vcvt.s32.f32 %v193
    %v210 = vsel %vm136, %v194, 0.0
    %v211 = vsel %vm136, %v196, 0.0
    %v212 = vadd.f32 %v210, %v211
    %v213 = vsel %vm136, %v198, 0.0
    %v214 = vadd.f32 %v212, %v213
    %v215 = vsel %vm136, %v200, 0.0
    %v216 = vadd.f32 %v214, %v215
    %v217 = vsel %vm136, %v202, 0.0
    %v218 = vadd.f32 %v216, %v217
    %v219 = vsel %vm136, %v204, 0.0
    %v220 = vadd.f32 %v218, %v219
    %v221 = vsel %vm136, %v206, 0.0
    %v222 = vadd.f32 %v220, %v221
    %v223 = vsel %vm136, %v208, 0.0
    %v224 = vadd.f32 %v222, %v223
    %v225 = vsel %vm136, %v195, 0.0
    %v226 = vsel %vm136, %v197, 0.0
    %v227 = vadd.f32 %v225, %v226
    %v228 = vsel %vm136, %v199, 0.0
    %v229 = vadd.f32 %v227, %v228
    %v230 = vsel %vm136, %v201, 0.0
    %v231 = vadd.f32 %v229, %v230
    %v232 = vsel %vm136, %v203, 0.0
    %v233 = vadd.f32 %v231, %v232
    %v234 = vsel %vm136, %v205, 0.0
    %v235 = vadd.f32 %v233, %v234
    %v236 = vsel %vm136, %v207, 0.0
    %v237 = vadd.f32 %v235, %v236
    %v238 = vsel %vm136, %v209, 0.0
    %v239 = vadd.f32 %v237, %v238
    %v240 = vsel %vm136, %v224, 0.0
    %v241 = vsel %vm136, %v239, 0.0
    %v242 = vadd.f32 %v240, %v241
    %v243 = vrot.slane %v242, 4
    %v244 = vadd.f32 %v242, %v243
    %v245 = vrot.slane %v244, 2
    %v246 = vadd.f32 %v244, %v245
    %v247 = vrot.slane %v246, 1
    %v248 = vadd.f32 %v246, %v247
    %249 = vst.msk [vmem:[#allocation7 + $0x1] sm:$0x1] %vm176, %v248
    // Predicated region
    $region18: #{tpu_custom_call.1} parent=1 // pred_check
      _
    $region19: #{tpu_custom_call.1} parent=1 // pred_check_branch
      %251 = sbr.rel (0) target = $region21
    $region20: #{tpu_custom_call.1} parent=1 // pred_region
      %s253 = ssub.s32 32, 32
      %254 = vsyncadd [#allocation4], %s253
      %s256 = sshll.u32 [#allocation7], 4
      %s257 = int_to_ptr.vmem [resolvable:$true] %s256
      %259 = dma.vmem_to_hbm [thread:$0]  %s257, 32, %s2, [#allocation4]
    $region21: #{tpu_custom_call.1} parent=1 // pred_fallthru
      _
    // Predicated region
    $region22: #{tpu_custom_call.1} parent=1 // pred_check
      _
    $region23: #{tpu_custom_call.1} parent=1 // pred_check_branch
      %261 = sbr.rel (0) target = $region25
    $region24: #{tpu_custom_call.1} parent=1 // pred_region
      %262 = dma.done [#allocation4], 32
    $region25: #{tpu_custom_call.1} parent=1 // pred_fallthru
      _
    %263 = vsyncpa [#allocation3], 1
    %264 = vsyncpa [#allocation6], 1
    %265 = vsyncpa [#allocation4], 1

</llo_original>
